<compile_context>
chip_gen: v5e
topology: v5e:2x2
jax: 0.10.0
libtpu: 0.0.40
codegen_flags: <defaults>
</compile_context>

<pallas_src>
import math

import jax
import jax.numpy as jnp
from jax.experimental import pallas as pl
from jax.experimental.pallas import tpu as pltpu

_LANE = 128
# Tile-sizing budget: conservative so the same code fits v7x (64 MiB/TC) as well
# as v5e/v6e.  Note the v5e *scoped default* is 16 MiB -- the explicit
# vmem_limit_bytes below is what makes a >16 MiB working set legal there.
_VMEM_BUDGET = 20 * 1024 * 1024
_VMEM_LIMIT = 32 * 1024 * 1024
_MAX_TILE_NL = 2048


def _round_up(x, m):
    return (x + m - 1) // m * m


def _sublane(itemsize):
    # Minimum second-minor tile multiple per dtype width: f32 -> 8, bf16 -> 16, int8 -> 32.
    return max(8, 32 // itemsize)


def _tile_granule(P, sub):
    # When tiling NL, the x block's last dim tnl*P must be a multiple of 128
    # (lane-dense) and tnl a multiple of the sublane count (out block).
    lane_g = _LANE // math.gcd(P, _LANE)
    return math.lcm(sub, lane_g)


def _choose_tile_nl(C, P, E_pad, NL, itemsize, max_tile_nl=None):
    """Largest layout-legal NL tile whose VMEM working set fits the budget."""
    sub = _sublane(itemsize)
    g = _tile_granule(P, sub)
    K = C * P
    # Resident weight; counted double-buffered to be safe even with a constant index_map.
    w_bytes = 2 * _round_up(K, sub) * E_pad * itemsize
    per_row = (
        2 * _round_up(C, sub) * P          # x block (double-buffered)
        + 2 * E_pad                        # out block (double-buffered)
        + P * _round_up(C, _LANE)          # xt scratch (length on sublanes, C on lanes)
        + _round_up(K, _LANE)              # a scratch (de-interleaved matmul LHS)
    ) * itemsize
    avail = max(_VMEM_BUDGET - w_bytes, per_row * g)
    cap = (avail // per_row) // g * g
    limit = _MAX_TILE_NL if max_tile_nl is None else max_tile_nl
    limit = max(g, limit // g * g)
    cap = max(g, min(cap, limit))
    # A single full-extent tile along NL is always layout-legal, so prefer it.
    return NL if NL <= cap else cap


def _patch_embed_kernel(x_ref, w_ref, o_ref, xt_ref, a_ref):
    # x_ref : (C, tnl*P)    one batch element, one NL tile, native channel-major
    #                       layout (lane-dense HBM->VMEM DMA).
    # w_ref : (C*P, E_pad)  folded Conv1d weight, k = p*C + c; VMEM resident.
    # o_ref : (tnl, E_pad)
    # xt_ref: (tnl*P, C)    scratch: tile transposed so patch positions sit on sublanes.
    # a_ref : (tnl, C*P)    scratch: de-interleaved matmul LHS.
    #
    # NOTE: when the last NL tile is partial, rows n >= NL of this block hold
    # unspecified (out-of-bounds) data.  Every op below is row-local in n (the
    # transpose, the stride-P copies, and the matmul contract only over k), so
    # garbage rows only produce garbage output rows, which Pallas drops on
    # writeback.  Do NOT add a reduction across the tnl axis without masking.
    C = x_ref.shape[0]
    tnl, K = a_ref.shape
    P = K // C

    # 1) Put the length axis on sublanes (2-D XLU transpose).  The x block stays
    #    lane-dense for the DMA; the relayout runs on-chip, overlapped with the
    #    next tile's DMA by the pipeline.
    xt_ref[...] = x_ref[...].T

    # 2) De-interleave patch positions: rows p, p+P, p+2P, ... of xt_ref are
    #    position p of consecutive patches.  Sublane-strided reads are native;
    #    the writes are contiguous lane windows.  P is small and static.
    for p in range(P):
        a_ref[:, p * C:(p + 1) * C] = xt_ref[pl.ds(p, tnl, stride=P), :]

    # 3) Single fused MXU contraction over K = C*P, f32 accumulation (matches the
    #    PyTorch Conv1d numerics).
    o_ref[...] = jnp.dot(
        a_ref[...], w_ref[...], preferred_element_type=jnp.float32
    ).astype(o_ref.dtype)


def patch_embed(x, weight, patch_size, *, compute_dtype=None, max_tile_nl=None):
    """PatchEmbed forward.

    x:      (B, C, L)           -- PyTorch Conv1d NCL layout
    weight: (E, C, patch_size)  -- PyTorch Conv1d weight (bias=False)
    returns (B, L // patch_size, E)   ('b l c')

    compute_dtype: optionally cast x/weight (e.g. jnp.bfloat16) to halve HBM
    traffic when the surrounding model allows; accumulation stays f32.
    """
    B, C, L = x.shape
    E, Cw, P = weight.shape
    assert Cw == C and P == patch_size
    NL = L // P
    assert NL > 0, "length must be at least patch_size"
    if L != NL * P:
        # Conv1d with stride == kernel_size drops the ragged tail.  Only this rare
        # ragged-L case pays an extra pass over x; a ragged NL below costs nothing.
        x = x[:, :, : NL * P]

    dtype = jnp.dtype(compute_dtype) if compute_dtype is not None else jnp.dtype(x.dtype)
    if x.dtype != dtype:
        x = x.astype(dtype)
    itemsize = dtype.itemsize

    # Fold the (tiny) weight to the fused-K layout w_k[p*C + c, e] = weight[e, c, p]
    # and pad embed_dim to a lane multiple so the MXU N dim and the output stores
    # are dense.  embed_dim % 128 == 0 skips both the pad and the final slice.
    E_pad = _round_up(E, _LANE)
    w_k = jnp.transpose(weight, (2, 1, 0)).reshape(P * C, E).astype(dtype)
    if E_pad != E:
        w_k = jnp.pad(w_k, ((0, 0), (0, E_pad - E)))

    tnl = _choose_tile_nl(C, P, E_pad, NL, itemsize, max_tile_nl)
    grid = (B, pl.cdiv(NL, tnl))  # ragged NL: last block is partial; no host pad/slice

    out = pl.pallas_call(
        _patch_embed_kernel,
        out_shape=jax.ShapeDtypeStruct((B, NL, E_pad), dtype),
        grid_spec=pltpu.PrefetchScalarGridSpec(
            num_scalar_prefetch=0,
            grid=grid,
            in_specs=[
                # x: batch squeezed, all channels, one lane-dense tile of tnl patches.
                # (If input DMA is still exposed, pipeline_mode=pl.Buffered(3) here.)
                pl.BlockSpec((None, C, tnl * P), lambda b, i: (b, 0, i)),
                # folded weight: constant block index -> fetched once, stays VMEM resident
                pl.BlockSpec((C * P, E_pad), lambda b, i: (0, 0)),
            ],
            out_specs=pl.BlockSpec((None, tnl, E_pad), lambda b, i: (b, i, 0)),
            scratch_shapes=[
                pltpu.VMEM((tnl * P, C), dtype),   # xt: length on sublanes
                pltpu.VMEM((tnl, C * P), dtype),   # a : de-interleaved matmul LHS
            ],
        ),
        compiler_params=pltpu.CompilerParams(
            dimension_semantics=("parallel", "parallel"),
            vmem_limit_bytes=_VMEM_LIMIT,
        ),
    )(x, w_k)

    if E_pad != E:
        out = out[:, :, :E]
    return out                                      # (B, NL, E) == 'b l c'


def _reference(x, weight, patch_size):
    B, C, L = x.shape
    NL = L // patch_size
    x_p = x[:, :, : NL * patch_size].reshape(B, C, NL, patch_size)
    return jnp.einsum("bclp,ecp->ble", x_p, weight)


if __name__ == "__main__":
    key = jax.random.PRNGKey(0)
    k1, k2, k3, k4 = jax.random.split(key, 4)

    # --- small demo shape (single full-extent tile) -------------------------
    batch, in_chans, length, patch_size, embed_dim = 2, 4, 16, 4, 32
    x = jax.random.normal(k1, (batch, in_chans, length), dtype=jnp.float32)
    weight = jax.random.normal(
        k2, (embed_dim, in_chans, patch_size), dtype=jnp.float32
    ) * 0.1

    out = jax.block_until_ready(patch_embed(x, weight, patch_size))
    ref = _reference(x, weight, patch_size)
    assert out.shape == (batch, length // patch_size, embed_dim)
    assert jnp.allclose(out, ref, atol=1e-5, rtol=1e-5), float(
        jnp.max(jnp.abs(out - ref))
    )

    # --- tiled + ragged-NL case (forces a partial last block, max_tile_nl=32) ---
    b2, c2, p2, e2 = 2, 3, 4, 32
    nl2 = 40
    l2 = nl2 * p2 + 3          # ragged L as well (conv drops the tail)
    x2 = jax.random.normal(k3, (b2, c2, l2), dtype=jnp.float32)
    w2 = jax.random.normal(k4, (e2, c2, p2), dtype=jnp.float32) * 0.1

    out2 = jax.block_until_ready(patch_embed(x2, w2, p2, max_tile_nl=32))
    ref2 = _reference(x2, w2, p2)
    assert out2.shape == (b2, nl2, e2)
    assert jnp.allclose(out2, ref2, atol=1e-5, rtol=1e-5), float(
        jnp.max(jnp.abs(out2 - ref2))
    )

    print("KERNEL_OK")
</pallas_src>

<mosaic_0001>
module attributes {stable_mosaic.version = 11 : i64} {
  func.func @_patch_embed_kernel(%arg0: i32, %arg1: i32, %arg2: memref<1x4x16xf32, #tpu.memory_space<vmem>>, %arg3: memref<16x128xf32, #tpu.memory_space<vmem>>, %arg4: memref<1x4x128xf32, #tpu.memory_space<vmem>>, %arg5: memref<16x4xf32, #tpu.memory_space<vmem>>, %arg6: memref<4x16xf32, #tpu.memory_space<vmem>>) attributes {dimension_semantics = [#tpu.dimension_semantics<parallel>, #tpu.dimension_semantics<parallel>], iteration_bounds = array<i64: 2, 1>, scalar_prefetch = 0 : i64, scratch_operands = 2 : i64, tpu.core_type = #tpu.core_type<tc>, window_params = [{transform_indices = @transform_0, window_bounds = array<i64: 1, 4, 16>}, {pipeline_mode = #tpu.pipeline_mode<synchronous>, transform_indices = @transform_1, window_bounds = array<i64: 16, 128>}, {transform_indices = @transform_2, window_bounds = array<i64: 1, 4, 128>}]} {
    %c0 = arith.constant 0 : index
    %c0_0 = arith.constant 0 : index
    %c0_1 = arith.constant 0 : index
    %0 = vector.load %arg2[%c0, %c0_0, %c0_1] : memref<1x4x16xf32, #tpu.memory_space<vmem>>, vector<1x4x16xf32>
    %1 = vector.shape_cast %0 : vector<1x4x16xf32> to vector<4x16xf32>
    %2 = tpu.transpose %1, [1, 0] : vector<4x16xf32> -> vector<16x4xf32>
    %c0_2 = arith.constant 0 : index
    %c0_3 = arith.constant 0 : index
    %3 = vector.load %arg5[%c0_2, %c0_3] : memref<16x4xf32, #tpu.memory_space<vmem>>, vector<16x4xf32>
    tpu.vector_store %arg5[%c0_2, %c0_3], %2 {strides = array<i32>} : memref<16x4xf32, #tpu.memory_space<vmem>>, vector<16x4xf32>,
    %c0_4 = arith.constant 0 : index
    %c0_5 = arith.constant 0 : index
    %4 = tpu.strided_load %arg5[%c0_4, %c0_5] {strides = array<i32: 4, 1>} : memref<16x4xf32, #tpu.memory_space<vmem>>, vector<4x4xf32>
    %c0_6 = arith.constant 0 : index
    %c0_7 = arith.constant 0 : index
    %5 = vector.load %arg6[%c0_6, %c0_7] : memref<4x16xf32, #tpu.memory_space<vmem>>, vector<4x4xf32>
    tpu.vector_store %arg6[%c0_6, %c0_7], %4 {strides = array<i32>} : memref<4x16xf32, #tpu.memory_space<vmem>>, vector<4x4xf32>,
    %c1 = arith.constant 1 : index
    %c0_8 = arith.constant 0 : index
    %6 = tpu.strided_load %arg5[%c1, %c0_8] {strides = array<i32: 4, 1>} : memref<16x4xf32, #tpu.memory_space<vmem>>, vector<4x4xf32>
    %c0_9 = arith.constant 0 : index
    %c4 = arith.constant 4 : index
    %7 = vector.load %arg6[%c0_9, %c4] : memref<4x16xf32, #tpu.memory_space<vmem>>, vector<4x4xf32>
    tpu.vector_store %arg6[%c0_9, %c4], %6 {strides = array<i32>} : memref<4x16xf32, #tpu.memory_space<vmem>>, vector<4x4xf32>,
    %c2 = arith.constant 2 : index
    %c0_10 = arith.constant 0 : index
    %8 = tpu.strided_load %arg5[%c2, %c0_10] {strides = array<i32: 4, 1>} : memref<16x4xf32, #tpu.memory_space<vmem>>, vector<4x4xf32>
    %c0_11 = arith.constant 0 : index
    %c8 = arith.constant 8 : index
    %9 = vector.load %arg6[%c0_11, %c8] : memref<4x16xf32, #tpu.memory_space<vmem>>, vector<4x4xf32>
    tpu.vector_store %arg6[%c0_11, %c8], %8 {strides = array<i32>} : memref<4x16xf32, #tpu.memory_space<vmem>>, vector<4x4xf32>,
    %c3 = arith.constant 3 : index
    %c0_12 = arith.constant 0 : index
    %10 = tpu.strided_load %arg5[%c3, %c0_12] {strides = array<i32: 4, 1>} : memref<16x4xf32, #tpu.memory_space<vmem>>, vector<4x4xf32>
    %c0_13 = arith.constant 0 : index
    %c12 = arith.constant 12 : index
    %11 = vector.load %arg6[%c0_13, %c12] : memref<4x16xf32, #tpu.memory_space<vmem>>, vector<4x4xf32>
    tpu.vector_store %arg6[%c0_13, %c12], %10 {strides = array<i32>} : memref<4x16xf32, #tpu.memory_space<vmem>>, vector<4x4xf32>,
    %c0_14 = arith.constant 0 : index
    %c0_15 = arith.constant 0 : index
    %12 = vector.load %arg6[%c0_14, %c0_15] : memref<4x16xf32, #tpu.memory_space<vmem>>, vector<4x16xf32>
    %c0_16 = arith.constant 0 : index
    %c0_17 = arith.constant 0 : index
    %13 = vector.load %arg3[%c0_16, %c0_17] : memref<16x128xf32, #tpu.memory_space<vmem>>, vector<16x128xf32>
    %cst = arith.constant dense<0.000000e+00> : vector<4x128xf32>
    %14 = tpu.matmul %12, %13, %cst {dimension_numbers = #tpu.dot_dimension_numbers<[1], [0], [0], [1], [0, 0, 1, 1], [], []>} : vector<4x16xf32>, vector<16x128xf32>, vector<4x128xf32> -> vector<4x128xf32>
    %c0_18 = arith.constant 0 : index
    %c0_19 = arith.constant 0 : index
    %c0_20 = arith.constant 0 : index
    %15 = vector.load %arg4[%c0_18, %c0_19, %c0_20] : memref<1x4x128xf32, #tpu.memory_space<vmem>>, vector<1x4x128xf32>
    %16 = vector.shape_cast %15 : vector<1x4x128xf32> to vector<4x128xf32>
    %17 = vector.shape_cast %14 : vector<4x128xf32> to vector<1x4x128xf32>
    tpu.vector_store %arg4[%c0_18, %c0_19, %c0_20], %17 {strides = array<i32>} : memref<1x4x128xf32, #tpu.memory_space<vmem>>, vector<1x4x128xf32>,
    return
  }
  func.func @transform_0(%arg0: i32, %arg1: i32) -> (i32, i32, i32) {
    %c0_i32 = arith.constant 0 : i32
    %c0_i32_0 = arith.constant 0 : i32
    return %arg0, %c0_i32, %arg1 : i32, i32, i32
  }
  func.func @transform_1(%arg0: i32, %arg1: i32) -> (i32, i32) {
    %c0_i32 = arith.constant 0 : i32
    %c0_i32_0 = arith.constant 0 : i32
    %c0_i32_1 = arith.constant 0 : i32
    return %c0_i32, %c0_i32_0 : i32, i32
  }
  func.func @transform_2(%arg0: i32, %arg1: i32) -> (i32, i32, i32) {
    %c0_i32 = arith.constant 0 : i32
    %c0_i32_0 = arith.constant 0 : i32
    return %arg0, %arg1, %c0_i32 : i32, i32, i32
  }
}

</mosaic_0001>

<llo_original>
// kernel: tpu_custom_call.1
$region0: #{tpu_custom_call.1}
  #allocation0 [shape = 'u32[]', space=smem, size = 0x4, offset = 0x4, fixed_abs, tag = 'smem constant byte address 0x4 - core index']
  #allocation1 [shape = 'u32[72,128]{1,0:T(1,128)}', space=vmem, size = 0x9000, scoped, tag = 'internal scratch']
  #allocation2 [shape = 'f32[16,4]{1,0:T(8,128)}', space=vmem, size = 0x2000, scoped, tag = 'scratch operand']
  #allocation3 [shape = 'f32[4,16]{1,0:T(4,128)}', space=vmem, size = 0x800, scoped, tag = 'scratch operand']
  %s0 = inlined_call_operand.hbm [shape: f32[2,4,16], index: 0, kind: input, shape index: {}]
  %s1 = inlined_call_operand.hbm [shape: f32[16,128], index: 1, kind: input, shape index: {}]
  %s2 = inlined_call_operand.hbm [shape: f32[2,4,128], index: 2, kind: output, shape index: {}]
  %s3 = sld [smem:[#allocation0]]
  $region49: #{tpu_custom_call.1} parent=0
    _
  %s5 = ssub.s32 1, %s3
  %s6 = scalar_select 0, %s5, %s3
  $region1: #{tpu_custom_call.1} parent=0
    #allocation4 [shape = 'u8[4096]{0}', space=vmem, size = 0x1000, scoped, tag = 'input window, operand 0']
    #allocation5 [shape = 's32[2]{0}', space=sflag, size = 0x8, scoped, tag = 'scoped memory for tpu_custom_call.1']
    #allocation6 [shape = 's32[2]{0}', space=sflag, size = 0x8, scoped, tag = 'scoped memory for tpu_custom_call.1']
    #allocation7 [shape = 'u8[8192]{0}', space=vmem, size = 0x2000, scoped, tag = 'input window, operand 1, single buffered']
    #allocation8 [shape = 's32[1]{0}', space=sflag, size = 0x4, scoped, tag = 'scoped memory for tpu_custom_call.1']
    #allocation9 [shape = 'u8[4096]{0}', space=vmem, size = 0x1000, scoped, tag = 'output window, operand 0']
    %7 = vsyncpa [#allocation5], 0
    %s8 = scalar_lea.sflag [#allocation5], 1
    %9 = vsyncpa %s8, 0
    %10 = vsyncpa [#allocation8], 0
    %11 = vsyncpa [#allocation6], 0
    %s12 = scalar_lea.sflag [#allocation6], 1
    %13 = vsyncpa %s12, 0
    loop: start=0, step=1, limit=4
    $region2: #{tpu_custom_call.1} parent=1 // loop_pre_header
      _
    $region3: #{tpu_custom_call.1} parent=1 // loop_header
      %s15 = sphi 0, %s19
      %p16 = scmp.ge.s32.totalorder %s15, 4
      %s22 = sphi 0, %s34
      %s23 = sphi 0, %s30
      %s24 = sphi 0, %s22
      %s25 = sphi 0, %s23
      %s26 = sphi 0, %s24
      %s27 = sphi 0, %s25
      %s39 = sphi 0, %s41
      %s42 = sphi 0, %s39
      %s43 = sphi 0, %s42
      %s59 = sphi 0, %s43
      %s63 = sphi 0, %s63
      %s65 = sphi 0, %s63
      %s66 = sphi 0, %s65
      %s80 = sphi 0, %s66
      %s88 = sphi 0, %s90
      %s91 = sphi 0, %s88
      %s92 = sphi 0, %s91
      %s108 = sphi 0, %s92
    $region4: #{tpu_custom_call.1} parent=1 // loop_header_branch
      %18 = sbr.rel (%p16) target = $region8
    $region5: #{tpu_custom_call.1} parent=1 // loop_body
      %s20 = ssub.s32 %s15, 1
      %s21 = ssub.s32 %s15, 2
      %s28 = sadd.s32 1, %s23
      %p29 = scmp.ge.s32.totalorder %s28, 1
      %s30 = scalar_select %p29, 0, %s28
      %s31 = sadd.s32 1, %s22
      %s32 = scalar_select %p29, %s31, %s22
      %p33 = scmp.ge.s32.totalorder %s32, 2
      %s34 = scalar_select %p33, 0, %s32
      %s35 = ssub.s32 %s22, %s34
      %s36 = ssub.s32 %s23, %s30
      %s37 = sor.u32 %s35, %s36
      %p38 = scmp.eq.s32.totalorder %s37, 0
      %s40 = sadd.s32 %s39, 1
      %s41 = scalar_select %p38, %s39, %s40
      %p44 = pneg %p38
      %p45 = scmp.eq.s32.totalorder %s15, 1
      %p46 = por %p44, %p45
      %p47 = scmp.ne.s32.totalorder %s39, %s42
      %p48 = scmp.eq.s32.totalorder %s15, 0
      %p49 = por %p47, %p48
      %p50 = scmp.ne.s32.totalorder %s39, %s42
      %p51 = scmp.eq.s32.totalorder %s20, 1
      %p52 = por %p50, %p51
      %p53 = scmp.ne.s32.totalorder %s42, %s43
      %p54 = scmp.eq.s32.totalorder %s20, 0
      %p55 = por %p53, %p54
      %p56 = scmp.ne.s32.totalorder %s42, %s43
      %p57 = scmp.eq.s32.totalorder %s21, 1
      %p58 = por %p56, %p57
      %p60 = scmp.ne.s32.totalorder %s43, %s59
      %p61 = scmp.eq.s32.totalorder %s21, 0
      %p62 = por %p60, %p61
      %s64 = sadd.s32 %s63, 1
      %p67 = scmp.eq.s32.totalorder %s15, 1
      %p68 = scmp.ne.s32.totalorder %s63, %s65
      %p69 = scmp.eq.s32.totalorder %s15, 0
      %p70 = por %p68, %p69
      %p71 = scmp.ne.s32.totalorder %s63, %s65
      %p72 = scmp.eq.s32.totalorder %s20, 1
      %p73 = por %p71, %p72
      %p74 = scmp.ne.s32.totalorder %s65, %s66
      %p75 = scmp.eq.s32.totalorder %s20, 0
      %p76 = por %p74, %p75
      %p77 = scmp.ne.s32.totalorder %s65, %s66
      %p78 = scmp.eq.s32.totalorder %s21, 1
      %p79 = por %p77, %p78
      %p81 = scmp.ne.s32.totalorder %s66, %s80
      %p82 = scmp.eq.s32.totalorder %s21, 0
      %p83 = por %p81, %p82
      %s84 = ssub.s32 %s22, %s34
      %s85 = ssub.s32 %s23, %s30
      %s86 = sor.u32 %s84, %s85
      %p87 = scmp.eq.s32.totalorder %s86, 0
      %s89 = sadd.s32 %s88, 1
      %s90 = scalar_select %p87, %s88, %s89
      %p93 = pneg %p87
      %p94 = scmp.eq.s32.totalorder %s15, 1
      %p95 = por %p93, %p94
      %p96 = scmp.ne.s32.totalorder %s88, %s91
      %p97 = scmp.eq.s32.totalorder %s15, 0
      %p98 = por %p96, %p97
      %p99 = scmp.ne.s32.totalorder %s88, %s91
      %p100 = scmp.eq.s32.totalorder %s20, 1
      %p101 = por %p99, %p100
      %p102 = scmp.ne.s32.totalorder %s91, %s92
      %p103 = scmp.eq.s32.totalorder %s20, 0
      %p104 = por %p102, %p103
      %p105 = scmp.ne.s32.totalorder %s91, %s92
      %p106 = scmp.eq.s32.totalorder %s21, 1
      %p107 = por %p105, %p106
      %p109 = scmp.ne.s32.totalorder %s92, %s108
      %p110 = scmp.eq.s32.totalorder %s21, 0
      %p111 = por %p109, %p110
      %p112 = scmp.le.s32.totalorder 1, %s15
      %p113 = scmp.lt.s32.totalorder %s15, 3
      %p114 = pnand %p112, %p113
      %p115 = pneg %p114
      // Predicated region
      $region9: #{tpu_custom_call.1} parent=5 // pred_check
        _
      $region10: #{tpu_custom_call.1} parent=5 // pred_check_branch
        %117 = sbr.rel (%p114) target = $region12
      $region11: #{tpu_custom_call.1} parent=5 // pred_region
        %s118 = ssub.s32 %s15, 1
        // Predicated region
        $region13: #{tpu_custom_call.1} parent=11 // pred_check
          %p119 = pneg %p76
        $region14: #{tpu_custom_call.1} parent=11 // pred_check_branch
          %121 = sbr.rel (%p119) target = $region16
        $region15: #{tpu_custom_call.1} parent=11 // pred_region
          %123 = vsyncadd [#allocation8], 0
          %s124 = sshll.u32 %s1, 4
          %s125 = int_to_ptr.hbm [resolvable:$true] %s124
          %s126 = sshll.u32 [#allocation7], 4
          %s127 = int_to_ptr.vmem [resolvable:$true] %s126
          %132 = dma.hbm_to_vmem [thread:$0]  %s125, 256, %s127, [#allocation8], 128, 128, 8
        $region16: #{tpu_custom_call.1} parent=11 // pred_fallthru
          _
      $region12: #{tpu_custom_call.1} parent=5 // pred_fallthru
        _
      %p133 = scmp.lt.s32.totalorder %s15, 2
      // Predicated region
      $region17: #{tpu_custom_call.1} parent=5 // pred_check
        %p134 = pneg %p133
      $region18: #{tpu_custom_call.1} parent=5 // pred_check_branch
        %136 = sbr.rel (%p134) target = $region20
      $region19: #{tpu_custom_call.1} parent=5 // pred_region
        // Predicated region
        $region21: #{tpu_custom_call.1} parent=19 // pred_check
          %p137 = pneg %p49
        $region22: #{tpu_custom_call.1} parent=19 // pred_check_branch
          %139 = sbr.rel (%p137) target = $region24
        $region23: #{tpu_custom_call.1} parent=19 // pred_region
          %s140 = sand.u32 %s39, 1
          %s141 = scalar_lea.sflag [#allocation5], %s140
          %s142 = sand.u32 %s39, 1
          %s143 = smul.addr %s142, 4
          %s144 = scalar_lea.vmem [#allocation4], %s143
          %146 = vsyncadd %s141, 0
          %s147 = sadd.s32 %s23, %s22
          %s148 = smul.addr %s147, 4
          %s149 = scalar_lea.hbm %s0, %s148
          %s151 = sshll.u32 %s149, 4
          %s152 = int_to_ptr.hbm [resolvable:$true] %s151
          %s153 = sshll.u32 %s144, 4
          %s154 = int_to_ptr.vmem [resolvable:$true] %s153
          %156 = dma.hbm_to_vmem [thread:$0]  %s152, 64, %s154, %s141
        $region24: #{tpu_custom_call.1} parent=19 // pred_fallthru
          _
      $region20: #{tpu_custom_call.1} parent=5 // pred_fallthru
        _
      %p157 = scmp.le.s32.totalorder 1, %s15
      %p158 = scmp.lt.s32.totalorder %s15, 3
      %p159 = pnand %p157, %p158
      %p160 = pneg %p159
      // Predicated region
      $region25: #{tpu_custom_call.1} parent=5 // pred_check
        _
      $region26: #{tpu_custom_call.1} parent=5 // pred_check_branch
        %162 = sbr.rel (%p159) target = $region28
      $region27: #{tpu_custom_call.1} parent=5 // pred_region
        %s163 = ssub.s32 %s15, 1
        %s164 = sand.u32 %s42, 1
        %s165 = scalar_lea.sflag [#allocation5], %s164
        %s166 = sand.u32 %s42, 1
        %s167 = smul.addr %s166, 4
        %s168 = scalar_lea.vmem [#allocation4], %s167
        // Predicated region
        $region29: #{tpu_custom_call.1} parent=27 // pred_check
          %p169 = pneg %p55
        $region30: #{tpu_custom_call.1} parent=27 // pred_check_branch
          %171 = sbr.rel (%p169) target = $region32
        $region31: #{tpu_custom_call.1} parent=27 // pred_region
          %173 = dma.done %s165, 64
        $region32: #{tpu_custom_call.1} parent=27 // pred_fallthru
          _
        // Predicated region
        $region33: #{tpu_custom_call.1} parent=27 // pred_check
          %p174 = pneg %p76
        $region34: #{tpu_custom_call.1} parent=27 // pred_check_branch
          %176 = sbr.rel (%p174) target = $region36
        $region35: #{tpu_custom_call.1} parent=27 // pred_region
          %178 = dma.done [#allocation8], 256
        $region36: #{tpu_custom_call.1} parent=27 // pred_fallthru
          _
        %s179 = sand.u32 %s42, 1
        %s180 = scalar_lea.sflag [#allocation5], %s179
        %s181 = sand.u32 %s42, 1
        %s182 = smul.addr %s181, 4
        %s183 = scalar_lea.vmem [#allocation4], %s182
        %p184 = pneg %p55
        %p185 = pneg %p52
        %p186 = pneg %p76
        %p187 = pneg %p73
        %p188 = pneg %p104
        %p189 = pneg %p101
        %s190 = sand.u32 %s91, 1
        %s191 = scalar_lea.sflag [#allocation6], %s190
        %s192 = sand.u32 %s91, 1
        %s193 = smul.addr %s192, 4
        %s194 = scalar_lea.vmem [#allocation9], %s193
        %v195 = vld [vmem:[%s168] sm:$0xf]
        %196 = vxpose.xlu0.b32.start [1/16] %v195, 128
        %197 = vxpose.xlu0.b32.cont [2/16] 0.0, 128
        %198 = vxpose.xlu0.b32.cont [3/16] 0.0, 128
        %199 = vxpose.xlu0.b32.cont [4/16] 0.0, 128
        %200 = vxpose.xlu0.b32.cont [5/16] 0.0, 128
        %201 = vxpose.xlu0.b32.cont [6/16] 0.0, 128
        %202 = vxpose.xlu0.b32.cont [7/16] 0.0, 128
        %203 = vxpose.xlu0.b32.cont [8/16] 0.0, 128
        %204 = vxpose.xlu0.b32.cont [9/16] 0.0, 128
        %205 = vxpose.xlu0.b32.cont [10/16] 0.0, 128
        %206 = vxpose.xlu0.b32.cont [11/16] 0.0, 128
        %207 = vxpose.xlu0.b32.cont [12/16] 0.0, 128
        %208 = vxpose.xlu0.b32.cont [13/16] 0.0, 128
        %209 = vxpose.xlu0.b32.cont [14/16] 0.0, 128
        %210 = vxpose.xlu0.b32.cont [15/16] 0.0, 128
        %211 = vxpose.xlu0.b32.end [16/16] 0.0, 128
        %v212 = vpop.trf.xlu0
        %v213 = vpop.trf.xlu0
        %v214 = vpop.trf.xlu0
        %v215 = vpop.trf.xlu0
        %v216 = vpop.trf.xlu0
        %v217 = vpop.trf.xlu0
        %v218 = vpop.trf.xlu0
        %v219 = vpop.trf.xlu0
        %v220 = vpop.trf.xlu0
        %v221 = vpop.trf.xlu0
        %v222 = vpop.trf.xlu0
        %v223 = vpop.trf.xlu0
        %v224 = vpop.trf.xlu0
        %v225 = vpop.trf.xlu0
        %v226 = vpop.trf.xlu0
        %v227 = vpop.trf.xlu0
        %vm228 = vcmask 31744
        %229 = vst.msk [vmem:[#allocation2] sm:$0xff] %vm228, %v212
        %230 = vst.msk [vmem:[#allocation2 + $0x8] sm:$0xff] %vm228, %v213
        %v231 = vld [vmem:[#allocation2] ss:$4 sm:$0xf]
        %vm232 = vcmask 27648
        %233 = vst.msk [vmem:[#allocation3] sm:$0xf] %vm232, %v231
        %s234 = scalar_lea.vmem [#allocation2], 1
        %v235 = vld [vmem:[%s234] ss:$4 sm:$0xf]
        %237 = vrot.lane.b32.xlu0 %v235, 4
        %v238 = vpop.permute.xlu0 %237
        %vm240 = vcmask 60448
        %241 = vst.msk [vmem:[#allocation3] sm:$0xf] %vm240, %v238
        %s242 = scalar_lea.vmem [#allocation2], 2
        %v243 = vld [vmem:[%s242] ss:$4 sm:$0xf]
        %245 = vrot.lane.b32.xlu0 %v243, 8
        %v246 = vpop.permute.xlu0 %245
        %vm248 = vcmask 93248
        %249 = vst.msk [vmem:[#allocation3] sm:$0xf] %vm248, %v246
        %s250 = scalar_lea.vmem [#allocation2], 3
        %v251 = vld [vmem:[%s250] ss:$4 sm:$0xf]
        %253 = vrot.lane.b32.xlu0 %v251, 12
        %v254 = vpop.permute.xlu0 %253
        %vm256 = vcmask 126048
        %257 = vst.msk [vmem:[#allocation3] sm:$0xf] %vm256, %v254
        %v258 = vld [vmem:[#allocation3] sm:$0xf]
        %v259 = vld [vmem:[#allocation7] sm:$0xff]
        %v260 = vld [vmem:[#allocation7 + $0x8] sm:$0xff]
        %vm261 = vcmask 130048
        %v263 = vsel %vm261, %v258, 0
        %265 = vmatpush.msra.mxu0 0.0
        %266 = vmatpush.msra.mxu0 0.0
        %267 = vmatpush.msra.mxu0 0.0
        %268 = vmatpush.msra.mxu0 0.0
        %269 = vmatpush.msra.mxu0 0.0
        %270 = vmatpush.msra.mxu0 0.0
        %271 = vmatpush.msra.mxu0 0.0
        %272 = vmatpush.msra.mxu0 0.0
        %273 = vmatpush.msra.mxu0 0.0
        %274 = vmatpush.msra.mxu0 0.0
        %275 = vmatpush.msra.mxu0 0.0
        %276 = vmatpush.msra.mxu0 0.0
        %277 = vmatpush.msra.mxu0 0.0
        %278 = vmatpush.msra.mxu0 0.0
        %279 = vmatpush.msra.mxu0 %v260
        %280 = vmatpush.msra.mxu0 %v259
        %281 = vmatmul.f32.gmra.mxu0 %v263
        %v282 = vpop.f32.mrf.mxu0
        %v283 = vadd.f32 0.0, %v282
        %284 = vdwg.mxu0
        %285 = vst [vmem:[%s194] sm:$0xf] %v283
        %s286 = sand.u32 %s91, 1
        %s287 = scalar_lea.sflag [#allocation6], %s286
        %s288 = sand.u32 %s91, 1
        %s289 = smul.addr %s288, 4
        %s290 = scalar_lea.vmem [#allocation9], %s289
        // Predicated region
        $region37: #{tpu_custom_call.1} parent=27 // pred_check
          %p291 = pneg %p101
        $region38: #{tpu_custom_call.1} parent=27 // pred_check_branch
          %293 = sbr.rel (%p291) target = $region40
        $region39: #{tpu_custom_call.1} parent=27 // pred_region
          %295 = vsyncadd %s287, 0
          %s296 = sadd.s32 %s25, %s24
          %s297 = smul.addr %s296, 4
          %s298 = scalar_lea.hbm %s2, %s297
          %s300 = sshll.u32 %s290, 4
          %s301 = int_to_ptr.vmem [resolvable:$true] %s300
          %s302 = sshll.u32 %s298, 4
          %s303 = int_to_ptr.hbm [resolvable:$true] %s302
          %305 = dma.vmem_to_hbm [thread:$0]  %s301, 64, %s303, %s287
        $region40: #{tpu_custom_call.1} parent=27 // pred_fallthru
          _
      $region28: #{tpu_custom_call.1} parent=5 // pred_fallthru
        _
      %p306 = scmp.le.s32.totalorder 2, %s15
      // Predicated region
      $region41: #{tpu_custom_call.1} parent=5 // pred_check
        %p307 = pneg %p306
      $region42: #{tpu_custom_call.1} parent=5 // pred_check_branch
        %309 = sbr.rel (%p307) target = $region44
      $region43: #{tpu_custom_call.1} parent=5 // pred_region
        %s310 = ssub.s32 %s15, 2
        // Predicated region
        $region45: #{tpu_custom_call.1} parent=43 // pred_check
          %p311 = pneg %p107
        $region46: #{tpu_custom_call.1} parent=43 // pred_check_branch
          %313 = sbr.rel (%p311) target = $region48
        $region47: #{tpu_custom_call.1} parent=43 // pred_region
          %s314 = sand.u32 %s92, 1
          %s315 = scalar_lea.sflag [#allocation6], %s314
          %s316 = sand.u32 %s92, 1
          %s317 = smul.addr %s316, 4
          %s318 = scalar_lea.vmem [#allocation9], %s317
          %320 = dma.done %s315, 64
        $region48: #{tpu_custom_call.1} parent=43 // pred_fallthru
          _
      $region44: #{tpu_custom_call.1} parent=5 // pred_fallthru
        _
    $region6: #{tpu_custom_call.1} parent=1 // loop_footer
      %s19 = sadd.s32 1, %s15
    $region7: #{tpu_custom_call.1} parent=1 // loop_footer_branch
      %14 = sbr.rel target = $region3
    $region8: #{tpu_custom_call.1} parent=1 // loop_exit
      _
    %321 = vsyncpa [#allocation5], 1
    %s322 = scalar_lea.sflag [#allocation5], 1
    %323 = vsyncpa %s322, 1
    %324 = vsyncpa [#allocation8], 1
    %325 = vsyncpa [#allocation6], 1
    %s326 = scalar_lea.sflag [#allocation6], 1
    %327 = vsyncpa %s326, 1

</llo_original>
